<compile_context>
chip_gen: v7x
topology: tpu7x:2x2x1
jax: 0.10.0
libtpu: 0.0.40
codegen_flags: <defaults>
</compile_context>

<pallas_src>
import jax
import jax.numpy as jnp
from jax.experimental import pallas as pl
from jax.experimental.pallas import tpu as pltpu

FRAME_I, FRAME_P, FRAME_B = "I", "P", "B"
MAX_FLOW = 2.0
_MAX_TILE_N = 8192  # lanes per block: 7 f32 tensors x 2 buffers x 96 KiB ~ 1.3 MiB VMEM


# ------------------------------------------------------------------ kernels

def _mode_net_kernel(prev_ref, next_ref, w_p_ref, w_n_ref, b_ref,
                     alpha_ref, beta_ref, vprev_ref, vnext_ref):
    """Fused ModeNet head: 1x1 conv (6->10 channel mix) + in-kernel activations.

    Blocks (batch squeezed): prev/next (3, T); alpha/beta (3, T); v_* (2, T).
    The tiny channel matmul is negligible next to HBM traffic; sigmoid/tanh
    run on the EUP slot while the kernel is DMA-bound, i.e. essentially free.
    """
    raw = (jnp.dot(w_p_ref[...], prev_ref[...], preferred_element_type=jnp.float32)
           + jnp.dot(w_n_ref[...], next_ref[...], preferred_element_type=jnp.float32)
           + b_ref[...])                                     # (10, T)
    alpha_ref[...] = jax.nn.sigmoid(raw[0:3])
    beta_ref[...] = jax.nn.sigmoid(raw[3:6])
    vprev_ref[...] = jnp.tanh(raw[6:8]) * MAX_FLOW
    vnext_ref[...] = jnp.tanh(raw[8:10]) * MAX_FLOW


def _blend_codec_kernel(alpha_ref, beta_ref, wp_ref, wn_ref, code_ref,
                        w_c_ref, w_w_ref, b_ref, result_ref, warped_ref):
    """Fused blend + CodecNet stand-in head + residual skip.

    warped = beta*warp_prev + (1-beta)*warp_next
    skip   = warped * (1 - alpha)
    codec  = W_c @ (alpha*code) + W_w @ (alpha*warped) + b    (1x1 conv, 6->3)
    result = codec + skip
    Only `result` and `warped` are written back to HBM; skip / in_codec /
    in_pred / the 6-channel concat stay in VMEM registers.
    """
    alpha = alpha_ref[...]
    beta = beta_ref[...]
    warped = beta * wp_ref[...] + (1.0 - beta) * wn_ref[...]
    skip = warped * (1.0 - alpha)
    in_codec = alpha * code_ref[...]
    in_pred = alpha * warped
    codec = (jnp.dot(w_c_ref[...], in_codec, preferred_element_type=jnp.float32)
             + jnp.dot(w_w_ref[...], in_pred, preferred_element_type=jnp.float32)
             + b_ref[...])
    result_ref[...] = (codec + skip).astype(result_ref.dtype)
    warped_ref[...] = warped.astype(warped_ref.dtype)


# ------------------------------------------------------------- pallas calls

def _vec_spec(c, tile):
    # (B, C, N_pad) array tiled as (batch-squeezed, C, tile); lane dim >= 128.
    return pl.BlockSpec((None, c, tile), lambda bi, ni: (bi, 0, ni))


def _const_spec(shape):
    nd = len(shape)
    return pl.BlockSpec(shape, lambda bi, ni, _nd=nd: (0,) * _nd)


def _choose_tile(n):
    """Pad N = H*W to a lane-aligned size and pick a lane-dense tile width."""
    n128 = -(-n // 128) * 128
    if n128 <= _MAX_TILE_N:
        return n128, n128
    n_pad = -(-n // _MAX_TILE_N) * _MAX_TILE_N
    return n_pad, _MAX_TILE_N


def mode_net_pallas(prev_bcn, next_bcn, mode_w, mode_b, tile):
    b, _, n_pad = prev_bcn.shape
    grid = (b, n_pad // tile)
    w_p, w_n = mode_w[:, 0:3], mode_w[:, 3:6]
    f32 = jnp.float32
    return pl.pallas_call(
        _mode_net_kernel,
        grid=grid,
        in_specs=[_vec_spec(3, tile), _vec_spec(3, tile),
                  _const_spec(w_p.shape), _const_spec(w_n.shape),
                  _const_spec(mode_b.shape)],
        out_specs=(_vec_spec(3, tile), _vec_spec(3, tile),
                   _vec_spec(2, tile), _vec_spec(2, tile)),
        out_shape=(jax.ShapeDtypeStruct((b, 3, n_pad), f32),
                   jax.ShapeDtypeStruct((b, 3, n_pad), f32),
                   jax.ShapeDtypeStruct((b, 2, n_pad), f32),
                   jax.ShapeDtypeStruct((b, 2, n_pad), f32)),
        compiler_params=pltpu.CompilerParams(
            dimension_semantics=("parallel", "parallel")),
    )(prev_bcn, next_bcn, w_p, w_n, mode_b)


def blend_codec_pallas(alpha, beta, warp_prev, warp_next, code,
                       codec_w, codec_b, tile):
    b, _, n_pad = code.shape
    grid = (b, n_pad // tile)
    w_c, w_w = codec_w[:, 0:3], codec_w[:, 3:6]
    f32 = jnp.float32
    return pl.pallas_call(
        _blend_codec_kernel,
        grid=grid,
        in_specs=[_vec_spec(3, tile)] * 5 + [
            _const_spec(w_c.shape), _const_spec(w_w.shape),
            _const_spec(codec_b.shape)],
        out_specs=(_vec_spec(3, tile), _vec_spec(3, tile)),
        out_shape=(jax.ShapeDtypeStruct((b, 3, n_pad), f32),
                   jax.ShapeDtypeStruct((b, 3, n_pad), f32)),
        compiler_params=pltpu.CompilerParams(
            dimension_semantics=("parallel", "parallel")),
    )(alpha, beta, warp_prev, warp_next, code, w_c, w_w, codec_b)


# ------------------------------------------------------------------ helpers

def _nchw_to_bcn(x, n_pad):
    """(B, C, H, W) -> (B, C, N_pad): pure reshape + (optional) zero pad."""
    b, c, h, w = x.shape
    x = x.reshape(b, c, h * w)
    if n_pad > h * w:
        x = jnp.pad(x, ((0, 0), (0, 0), (0, n_pad - h * w)))
    return x


def _bcn_to_nchw(x, h, w):
    """(B, C, N_pad) -> (B, C, H, W): crop padding + pure reshape."""
    b, c, _ = x.shape
    return x[:, :, :h * w].reshape(b, c, h, w)


def bilinear_warp(x, flow):
    """Border-clamped bilinear warp. x: (B,C,H,W), flow: (B,2,H,W) (dx, dy).

    TODO(synk): data-dependent gather with no clean Pallas-TPU equivalent;
                kept in plain JAX.
    """
    b, c, h, w = x.shape
    gy, gx = jnp.meshgrid(jnp.arange(h, dtype=jnp.float32),
                          jnp.arange(w, dtype=jnp.float32), indexing="ij")
    sy = gy[None] + flow[:, 1]
    sx = gx[None] + flow[:, 0]
    y0f = jnp.floor(sy)
    x0f = jnp.floor(sx)
    wy = (sy - y0f)[:, None]
    wx = (sx - x0f)[:, None]
    y0 = jnp.clip(y0f.astype(jnp.int32), 0, h - 1)
    y1 = jnp.clip(y0 + 1, 0, h - 1)
    x0 = jnp.clip(x0f.astype(jnp.int32), 0, w - 1)
    x1 = jnp.clip(x0 + 1, 0, w - 1)

    bi = jnp.arange(b)[:, None, None, None]
    ci = jnp.arange(c)[None, :, None, None]

    def gather(yy, xx):
        return x[bi, ci, yy[:, None], xx[:, None]]

    v00, v01 = gather(y0, x0), gather(y0, x1)
    v10, v11 = gather(y1, x0), gather(y1, x1)
    return ((1.0 - wy) * ((1.0 - wx) * v00 + wx * v01)
            + wy * ((1.0 - wx) * v10 + wx * v11))


def in_layer(x):
    # TODO(synk): real InputLayer (YUV dict -> planar tensor) not in snippet.
    return x


def out_layer(x):
    # TODO(synk): real OutputLayer not in snippet.
    return x


# --------------------------------------------------------------- parameters

def init_params(key):
    k1, k2 = jax.random.split(key, 2)
    return {
        # ModeNet head: in_c = 6 (prev ++ next), out = alpha(3)+beta(3)+v_prev(2)+v_next(2)
        "mode_w": 0.1 * jax.random.normal(k1, (10, 6), jnp.float32),
        "mode_b": jnp.zeros((10, 1), jnp.float32),
        # CodecNet head: in_c = 6 (code ++ prediction), out_c = 3
        "codec_w": 0.1 * jax.random.normal(k2, (3, 6), jnp.float32),
        "codec_b": jnp.zeros((3, 1), jnp.float32),
    }


# ------------------------------------------------------------------ forward

def fullnet_forward(params, param):
    code_nchw = in_layer(param["code_dic"])
    prev_nchw = in_layer(param["prev_dic"])
    next_nchw = in_layer(param["next_dic"])
    frame_type = param["frame_type"]
    b, _, h, w = prev_nchw.shape
    n = h * w
    n_pad, tile = _choose_tile(n)

    code = _nchw_to_bcn(code_nchw, n_pad)
    prev_b = _nchw_to_bcn(prev_nchw, n_pad)
    next_b = _nchw_to_bcn(next_nchw, n_pad)

    zero_rate = jnp.zeros((1, 1, 1, 1), jnp.float32)

    if frame_type == FRAME_I:
        # ModeNet skipped: alpha = 1, beta = 1, zero motion.
        alpha_bcn = jnp.ones((b, 3, n_pad), jnp.float32)
        beta_bcn = jnp.ones((b, 3, n_pad), jnp.float32)
        v_prev = jnp.zeros((b, 2, h, w), jnp.float32)
        v_next = jnp.zeros((b, 2, h, w), jnp.float32)
    else:
        alpha_bcn, beta_bcn, vprev_bcn, vnext_bcn = mode_net_pallas(
            prev_b, next_b, params["mode_w"], params["mode_b"], tile)
        v_prev = _bcn_to_nchw(vprev_bcn, h, w)
        v_next = _bcn_to_nchw(vnext_bcn, h, w)
        if frame_type != FRAME_B:
            beta_bcn = jnp.ones_like(beta_bcn)   # P frames: beta forced to 1

    # TODO(synk): ModeNet entropy model undefined in snippet -> zero rates.
    mode_rate_y, mode_rate_z = zero_rate, zero_rate

    # Motion compensation (gather-based warp in plain JAX); blend/codec fused in Pallas.
    warp_prev = _nchw_to_bcn(bilinear_warp(prev_nchw, v_prev), n_pad)
    warp_next = _nchw_to_bcn(bilinear_warp(next_nchw, v_next), n_pad)

    result_bcn, warped_bcn = blend_codec_pallas(
        alpha_bcn, beta_bcn, warp_prev, warp_next, code,
        params["codec_w"], params["codec_b"], tile)

    result = _bcn_to_nchw(result_bcn, h, w)
    warped_ref = _bcn_to_nchw(warped_bcn, h, w)
    alpha = _bcn_to_nchw(alpha_bcn, h, w)
    beta = _bcn_to_nchw(beta_bcn, h, w)

    x_hat = out_layer(result)
    x_hat_y, x_hat_u, x_hat_v = x_hat[:, 0:1], x_hat[:, 1:2], x_hat[:, 2:3]
    code_u = code_nchw[:, 1:2]
    # Same abs() + right/bottom replication padding as the PyTorch spec.
    nb_pad_row = abs(code_u.shape[2] - x_hat_u.shape[2])
    nb_pad_col = abs(code_u.shape[3] - x_hat_u.shape[3])

    def rep_pad(t):  # ReplicationPad2d((0, nb_pad_col, 0, nb_pad_row))
        if nb_pad_row == 0 and nb_pad_col == 0:
            return t
        return jnp.pad(t, ((0, 0), (0, 0), (0, nb_pad_row), (0, nb_pad_col)),
                       mode="edge")

    x_hat_dic = {"y": x_hat_y, "u": rep_pad(x_hat_u), "v": rep_pad(x_hat_v)}

    # TODO(synk): CodecNet entropy model / bitstream writer undefined -> zero rates.
    return {
        "x_hat": x_hat_dic,
        "alpha": alpha,
        "beta": beta,
        "warping": warped_ref,
        "code": code_nchw,
        "codec_rate_y": zero_rate,
        "codec_rate_z": zero_rate,
        "mode_rate_y": mode_rate_y,
        "mode_rate_z": mode_rate_z,
    }


# ------------------------------------------------------------ JAX reference

def _reference_forward(params, code, prev, nxt, frame_type):
    """Pure-JAX (XLA) reference of the stand-in network, for verification."""
    b, _, h, w = prev.shape
    if frame_type == FRAME_I:
        alpha = jnp.ones_like(code)
        beta = jnp.ones_like(code)
        v_prev = jnp.zeros((b, 2, h, w), jnp.float32)
        v_next = jnp.zeros((b, 2, h, w), jnp.float32)
    else:
        x = jnp.concatenate([prev, nxt], axis=1)
        raw = (jnp.einsum("oc,bchw->bohw", params["mode_w"], x)
               + params["mode_b"].reshape(1, -1, 1, 1))
        alpha = jax.nn.sigmoid(raw[:, 0:3])
        beta = jax.nn.sigmoid(raw[:, 3:6])
        v_prev = jnp.tanh(raw[:, 6:8]) * MAX_FLOW
        v_next = jnp.tanh(raw[:, 8:10]) * MAX_FLOW
        if frame_type != FRAME_B:
            beta = jnp.ones_like(beta)
    wp = bilinear_warp(prev, v_prev)
    wn = bilinear_warp(nxt, v_next)
    warped = beta * wp + (1.0 - beta) * wn
    skip = warped * (1.0 - alpha)
    xin = jnp.concatenate([alpha * code, alpha * warped], axis=1)
    codec = (jnp.einsum("oc,bchw->bohw", params["codec_w"], xin)
             + params["codec_b"].reshape(1, -1, 1, 1))
    return codec + skip, warped


# --------------------------------------------------------------------- main

if __name__ == "__main__":
    B, C, H, W = 2, 3, 16, 16
    key = jax.random.PRNGKey(0)
    kc, kp, kn = jax.random.split(key, 3)
    code = jax.random.uniform(kc, (B, C, H, W), jnp.float32)
    prev = jax.random.uniform(kp, (B, C, H, W), jnp.float32)
    nxt = jax.random.uniform(kn, (B, C, H, W), jnp.float32)

    params = init_params(jax.random.PRNGKey(42))

    for ftype in (FRAME_B, FRAME_I):
        net_out = fullnet_forward(
            params,
            {"code_dic": code, "prev_dic": prev, "next_dic": nxt,
             "frame_type": ftype},
        )
        jax.block_until_ready(net_out)
        assert net_out["x_hat"]["y"].shape == (B, 1, H, W)
        assert net_out["alpha"].shape == (B, C, H, W)

        ref_result, ref_warped = _reference_forward(params, code, prev, nxt, ftype)
        got_result = jnp.concatenate(
            [net_out["x_hat"]["y"], net_out["x_hat"]["u"], net_out["x_hat"]["v"]],
            axis=1)
        assert jnp.allclose(got_result, ref_result, atol=2e-2, rtol=2e-2), ftype
        assert jnp.allclose(net_out["warping"], ref_warped, atol=2e-2, rtol=2e-2), ftype

    print("KERNEL_OK")
</pallas_src>

<mosaic_0001>
module attributes {stable_mosaic.version = 11 : i64} {
  func.func @_mode_net_kernel(%arg0: i32, %arg1: i32, %arg2: memref<1x3x256xf32, #tpu.memory_space<vmem>>, %arg3: memref<1x3x256xf32, #tpu.memory_space<vmem>>, %arg4: memref<10x3xf32, #tpu.memory_space<vmem>>, %arg5: memref<10x3xf32, #tpu.memory_space<vmem>>, %arg6: memref<10x1xf32, #tpu.memory_space<vmem>>, %arg7: memref<1x3x256xf32, #tpu.memory_space<vmem>>, %arg8: memref<1x3x256xf32, #tpu.memory_space<vmem>>, %arg9: memref<1x2x256xf32, #tpu.memory_space<vmem>>, %arg10: memref<1x2x256xf32, #tpu.memory_space<vmem>>) attributes {dimension_semantics = [#tpu.dimension_semantics<parallel>, #tpu.dimension_semantics<parallel>], iteration_bounds = array<i64: 2, 1>, scalar_prefetch = 0 : i64, scratch_operands = 0 : i64, tpu.core_type = #tpu.core_type<tc>, window_params = [{transform_indices = @transform_0, window_bounds = array<i64: 1, 3, 256>}, {transform_indices = @transform_1, window_bounds = array<i64: 1, 3, 256>}, {pipeline_mode = #tpu.pipeline_mode<synchronous>, transform_indices = @transform_2, window_bounds = array<i64: 10, 3>}, {pipeline_mode = #tpu.pipeline_mode<synchronous>, transform_indices = @transform_3, window_bounds = array<i64: 10, 3>}, {pipeline_mode = #tpu.pipeline_mode<synchronous>, transform_indices = @transform_4, window_bounds = array<i64: 10, 1>}, {transform_indices = @transform_5, window_bounds = array<i64: 1, 3, 256>}, {transform_indices = @transform_6, window_bounds = array<i64: 1, 3, 256>}, {transform_indices = @transform_7, window_bounds = array<i64: 1, 2, 256>}, {transform_indices = @transform_8, window_bounds = array<i64: 1, 2, 256>}]} {
    %c0 = arith.constant 0 : index
    %c0_0 = arith.constant 0 : index
    %0 = vector.load %arg4[%c0, %c0_0] : memref<10x3xf32, #tpu.memory_space<vmem>>, vector<10x3xf32>
    %c0_1 = arith.constant 0 : index
    %c0_2 = arith.constant 0 : index
    %c0_3 = arith.constant 0 : index
    %1 = vector.load %arg2[%c0_1, %c0_2, %c0_3] : memref<1x3x256xf32, #tpu.memory_space<vmem>>, vector<1x3x256xf32>
    %2 = vector.shape_cast %1 : vector<1x3x256xf32> to vector<3x256xf32>
    %cst = arith.constant dense<0.000000e+00> : vector<10x256xf32>
    %3 = tpu.matmul %0, %2, %cst {dimension_numbers = #tpu.dot_dimension_numbers<[1], [0], [0], [1], [0, 0, 1, 1], [], []>} : vector<10x3xf32>, vector<3x256xf32>, vector<10x256xf32> -> vector<10x256xf32>
    %c0_4 = arith.constant 0 : index
    %c0_5 = arith.constant 0 : index
    %4 = vector.load %arg5[%c0_4, %c0_5] : memref<10x3xf32, #tpu.memory_space<vmem>>, vector<10x3xf32>
    %c0_6 = arith.constant 0 : index
    %c0_7 = arith.constant 0 : index
    %c0_8 = arith.constant 0 : index
    %5 = vector.load %arg3[%c0_6, %c0_7, %c0_8] : memref<1x3x256xf32, #tpu.memory_space<vmem>>, vector<1x3x256xf32>
    %6 = vector.shape_cast %5 : vector<1x3x256xf32> to vector<3x256xf32>
    %cst_9 = arith.constant dense<0.000000e+00> : vector<10x256xf32>
    %7 = tpu.matmul %4, %6, %cst_9 {dimension_numbers = #tpu.dot_dimension_numbers<[1], [0], [0], [1], [0, 0, 1, 1], [], []>} : vector<10x3xf32>, vector<3x256xf32>, vector<10x256xf32> -> vector<10x256xf32>
    %8 = arith.addf %3, %7 : vector<10x256xf32>
    %c0_10 = arith.constant 0 : index
    %c0_11 = arith.constant 0 : index
    %9 = vector.load %arg6[%c0_10, %c0_11] : memref<10x1xf32, #tpu.memory_space<vmem>>, vector<10x1xf32>
    %10 = vector.broadcast %9 : vector<10x1xf32> to vector<10x256xf32>
    %11 = arith.addf %8, %10 : vector<10x256xf32>
    %12 = vector.extract_strided_slice %11 {offsets = [0, 0], sizes = [3, 256], strides = [1, 1]} : vector<10x256xf32> to vector<3x256xf32>
    %13 = arith.negf %12 : vector<3x256xf32>
    %14 = math.exp %13 : vector<3x256xf32>
    %cst_12 = arith.constant 1.000000e+00 : f32
    %15 = vector.broadcast %cst_12 : f32 to vector<3x256xf32>
    %16 = arith.addf %15, %14 : vector<3x256xf32>
    %17 = arith.divf %15, %16 : vector<3x256xf32>
    %c0_13 = arith.constant 0 : index
    %c0_14 = arith.constant 0 : index
    %c0_15 = arith.constant 0 : index
    %18 = vector.load %arg7[%c0_13, %c0_14, %c0_15] : memref<1x3x256xf32, #tpu.memory_space<vmem>>, vector<1x3x256xf32>
    %19 = vector.shape_cast %18 : vector<1x3x256xf32> to vector<3x256xf32>
    %20 = vector.shape_cast %17 : vector<3x256xf32> to vector<1x3x256xf32>
    tpu.vector_store %arg7[%c0_13, %c0_14, %c0_15], %20 {strides = array<i32>} : memref<1x3x256xf32, #tpu.memory_space<vmem>>, vector<1x3x256xf32>,
    %21 = vector.extract_strided_slice %11 {offsets = [3, 0], sizes = [3, 256], strides = [1, 1]} : vector<10x256xf32> to vector<3x256xf32>
    %22 = arith.negf %21 : vector<3x256xf32>
    %23 = math.exp %22 : vector<3x256xf32>
    %cst_16 = arith.constant 1.000000e+00 : f32
    %24 = vector.broadcast %cst_16 : f32 to vector<3x256xf32>
    %25 = arith.addf %24, %23 : vector<3x256xf32>
    %26 = arith.divf %24, %25 : vector<3x256xf32>
    %c0_17 = arith.constant 0 : index
    %c0_18 = arith.constant 0 : index
    %c0_19 = arith.constant 0 : index
    %27 = vector.load %arg8[%c0_17, %c0_18, %c0_19] : memref<1x3x256xf32, #tpu.memory_space<vmem>>, vector<1x3x256xf32>
    %28 = vector.shape_cast %27 : vector<1x3x256xf32> to vector<3x256xf32>
    %29 = vector.shape_cast %26 : vector<3x256xf32> to vector<1x3x256xf32>
    tpu.vector_store %arg8[%c0_17, %c0_18, %c0_19], %29 {strides = array<i32>} : memref<1x3x256xf32, #tpu.memory_space<vmem>>, vector<1x3x256xf32>,
    %30 = vector.extract_strided_slice %11 {offsets = [6, 0], sizes = [2, 256], strides = [1, 1]} : vector<10x256xf32> to vector<2x256xf32>
    %31 = math.tanh %30 : vector<2x256xf32>
    %cst_20 = arith.constant 2.000000e+00 : f32
    %32 = vector.broadcast %cst_20 : f32 to vector<2x256xf32>
    %33 = arith.mulf %31, %32 : vector<2x256xf32>
    %c0_21 = arith.constant 0 : index
    %c0_22 = arith.constant 0 : index
    %c0_23 = arith.constant 0 : index
    %34 = vector.load %arg9[%c0_21, %c0_22, %c0_23] : memref<1x2x256xf32, #tpu.memory_space<vmem>>, vector<1x2x256xf32>
    %35 = vector.shape_cast %34 : vector<1x2x256xf32> to vector<2x256xf32>
    %36 = vector.shape_cast %33 : vector<2x256xf32> to vector<1x2x256xf32>
    tpu.vector_store %arg9[%c0_21, %c0_22, %c0_23], %36 {strides = array<i32>} : memref<1x2x256xf32, #tpu.memory_space<vmem>>, vector<1x2x256xf32>,
    %37 = vector.extract_strided_slice %11 {offsets = [8, 0], sizes = [2, 256], strides = [1, 1]} : vector<10x256xf32> to vector<2x256xf32>
    %38 = math.tanh %37 : vector<2x256xf32>
    %cst_24 = arith.constant 2.000000e+00 : f32
    %39 = vector.broadcast %cst_24 : f32 to vector<2x256xf32>
    %40 = arith.mulf %38, %39 : vector<2x256xf32>
    %c0_25 = arith.constant 0 : index
    %c0_26 = arith.constant 0 : index
    %c0_27 = arith.constant 0 : index
    %41 = vector.load %arg10[%c0_25, %c0_26, %c0_27] : memref<1x2x256xf32, #tpu.memory_space<vmem>>, vector<1x2x256xf32>
    %42 = vector.shape_cast %41 : vector<1x2x256xf32> to vector<2x256xf32>
    %43 = vector.shape_cast %40 : vector<2x256xf32> to vector<1x2x256xf32>
    tpu.vector_store %arg10[%c0_25, %c0_26, %c0_27], %43 {strides = array<i32>} : memref<1x2x256xf32, #tpu.memory_space<vmem>>, vector<1x2x256xf32>,
    return
  }
  func.func @transform_0(%arg0: i32, %arg1: i32) -> (i32, i32, i32) {
    %c0_i32 = arith.constant 0 : i32
    %c0_i32_0 = arith.constant 0 : i32
    return %arg0, %c0_i32, %arg1 : i32, i32, i32
  }
  func.func @transform_1(%arg0: i32, %arg1: i32) -> (i32, i32, i32) {
    %c0_i32 = arith.constant 0 : i32
    %c0_i32_0 = arith.constant 0 : i32
    return %arg0, %c0_i32, %arg1 : i32, i32, i32
  }
  func.func @transform_2(%arg0: i32, %arg1: i32) -> (i32, i32) {
    %c0_i32 = arith.constant 0 : i32
    %c0_i32_0 = arith.constant 0 : i32
    %c0_i32_1 = arith.constant 0 : i32
    return %c0_i32, %c0_i32_0 : i32, i32
  }
  func.func @transform_3(%arg0: i32, %arg1: i32) -> (i32, i32) {
    %c0_i32 = arith.constant 0 : i32
    %c0_i32_0 = arith.constant 0 : i32
    %c0_i32_1 = arith.constant 0 : i32
    return %c0_i32, %c0_i32_0 : i32, i32
  }
  func.func @transform_4(%arg0: i32, %arg1: i32) -> (i32, i32) {
    %c0_i32 = arith.constant 0 : i32
    %c0_i32_0 = arith.constant 0 : i32
    %c0_i32_1 = arith.constant 0 : i32
    return %c0_i32, %c0_i32_0 : i32, i32
  }
  func.func @transform_5(%arg0: i32, %arg1: i32) -> (i32, i32, i32) {
    %c0_i32 = arith.constant 0 : i32
    %c0_i32_0 = arith.constant 0 : i32
    return %arg0, %c0_i32, %arg1 : i32, i32, i32
  }
  func.func @transform_6(%arg0: i32, %arg1: i32) -> (i32, i32, i32) {
    %c0_i32 = arith.constant 0 : i32
    %c0_i32_0 = arith.constant 0 : i32
    return %arg0, %c0_i32, %arg1 : i32, i32, i32
  }
  func.func @transform_7(%arg0: i32, %arg1: i32) -> (i32, i32, i32) {
    %c0_i32 = arith.constant 0 : i32
    %c0_i32_0 = arith.constant 0 : i32
    return %arg0, %c0_i32, %arg1 : i32, i32, i32
  }
  func.func @transform_8(%arg0: i32, %arg1: i32) -> (i32, i32, i32) {
    %c0_i32 = arith.constant 0 : i32
    %c0_i32_0 = arith.constant 0 : i32
    return %arg0, %c0_i32, %arg1 : i32, i32, i32
  }
}

</mosaic_0001>

<llo_original>
// kernel: tpu_custom_call.1
$region0: #{tpu_custom_call.1}
  #allocation0 [shape = 'u32[]', space=smem, size = 0x4, offset = 0x4, fixed_abs, tag = 'smem constant byte address 0x4 - core index']
  #allocation1 [shape = 'u32[144,128]{1,0:T(1,128)}', space=vmem, size = 0x12000, scoped, tag = 'internal scratch']
  %s0 = inlined_call_operand.vmem [shape: f32[2,3,256], index: 0, kind: input, shape index: {}]
  %s1 = inlined_call_operand.vmem [shape: f32[2,3,256], index: 1, kind: input, shape index: {}]
  %s2 = inlined_call_operand.vmem [shape: f32[10,3], index: 2, kind: input, shape index: {}]
  %s3 = inlined_call_operand.vmem [shape: f32[10,3], index: 3, kind: input, shape index: {}]
  %s4 = inlined_call_operand.vmem [shape: f32[10,1], index: 4, kind: input, shape index: {}]
  %s5 = inlined_call_operand.vmem [shape: f32[2,3,256], index: 5, kind: output, shape index: {0}]
  %s6 = inlined_call_operand.vmem [shape: f32[2,3,256], index: 6, kind: output, shape index: {1}]
  %s7 = inlined_call_operand.hbm [shape: f32[2,2,256], index: 7, kind: output, shape index: {2}]
  %s8 = inlined_call_operand.hbm [shape: f32[2,2,256], index: 8, kind: output, shape index: {3}]
  %9 = xla_tuple %s5, %s6, %s7, %s8
  %s10 = sld [smem:[#allocation0]]
  $region77: #{tpu_custom_call.1} parent=0
    _
  %s12 = ssub.s32 1, %s10
  %s13 = scalar_select 0, %s12, %s10
  $region1: #{tpu_custom_call.1} parent=0
    #allocation2 [shape = 'u8[4096]{0}', space=vmem, size = 0x1000, scoped, tag = 'output window, operand 2']
    #allocation3 [shape = 's32[2]{0}', space=sflag, size = 0x8, scoped, tag = 'scoped memory for tpu_custom_call.1']
    #allocation4 [shape = 'u8[4096]{0}', space=vmem, size = 0x1000, scoped, tag = 'output window, operand 3']
    #allocation5 [shape = 's32[2]{0}', space=sflag, size = 0x8, scoped, tag = 'scoped memory for tpu_custom_call.1']
    %14 = vsyncpa [#allocation3], 0
    %s15 = scalar_lea.sflag [#allocation3], 1
    %16 = vsyncpa %s15, 0
    %17 = vsyncpa [#allocation5], 0
    %s18 = scalar_lea.sflag [#allocation5], 1
    %19 = vsyncpa %s18, 0
    loop: start=0, step=1, limit=4
    $region2: #{tpu_custom_call.1} parent=1 // loop_pre_header
      _
    $region3: #{tpu_custom_call.1} parent=1 // loop_header
      %s21 = sphi 0, %s25
      %p22 = scmp.ge.s32.totalorder %s21, 4
      %s28 = sphi 0, %s40
      %s29 = sphi 0, %s36
      %s30 = sphi 0, %s28
      %s31 = sphi 0, %s29
      %s32 = sphi 0, %s30
      %s33 = sphi 0, %s31
      %s45 = sphi 0, %s47
      %s48 = sphi 0, %s45
      %s49 = sphi 0, %s48
      %s65 = sphi 0, %s49
      %s73 = sphi 0, %s75
      %s76 = sphi 0, %s73
      %s77 = sphi 0, %s76
      %s93 = sphi 0, %s77
      %s97 = sphi 0, %s97
      %s99 = sphi 0, %s97
      %s100 = sphi 0, %s99
      %s114 = sphi 0, %s100
      %s118 = sphi 0, %s118
      %s120 = sphi 0, %s118
      %s121 = sphi 0, %s120
      %s135 = sphi 0, %s121
      %s139 = sphi 0, %s139
      %s141 = sphi 0, %s139
      %s142 = sphi 0, %s141
      %s156 = sphi 0, %s142
      %s164 = sphi 0, %s166
      %s167 = sphi 0, %s164
      %s168 = sphi 0, %s167
      %s184 = sphi 0, %s168
      %s192 = sphi 0, %s194
      %s195 = sphi 0, %s192
      %s196 = sphi 0, %s195
      %s212 = sphi 0, %s196
      %s220 = sphi 0, %s222
      %s223 = sphi 0, %s220
      %s224 = sphi 0, %s223
      %s240 = sphi 0, %s224
      %s248 = sphi 0, %s250
      %s251 = sphi 0, %s248
      %s252 = sphi 0, %s251
      %s268 = sphi 0, %s252
    $region4: #{tpu_custom_call.1} parent=1 // loop_header_branch
      %24 = sbr.rel (%p22) target = $region8
    $region5: #{tpu_custom_call.1} parent=1 // loop_body
      %s26 = ssub.s32 %s21, 1
      %s27 = ssub.s32 %s21, 2
      %s34 = sadd.s32 1, %s29
      %p35 = scmp.ge.s32.totalorder %s34, 1
      %s36 = scalar_select %p35, 0, %s34
      %s37 = sadd.s32 1, %s28
      %s38 = scalar_select %p35, %s37, %s28
      %p39 = scmp.ge.s32.totalorder %s38, 2
      %s40 = scalar_select %p39, 0, %s38
      %s41 = ssub.s32 %s28, %s40
      %s42 = ssub.s32 %s29, %s36
      %s43 = sor.u32 %s41, %s42
      %p44 = scmp.eq.s32.totalorder %s43, 0
      %s46 = sadd.s32 %s45, 1
      %s47 = scalar_select %p44, %s45, %s46
      %p50 = pneg %p44
      %p51 = scmp.eq.s32.totalorder %s21, 1
      %p52 = por %p50, %p51
      %p53 = scmp.ne.s32.totalorder %s45, %s48
      %p54 = scmp.eq.s32.totalorder %s21, 0
      %p55 = por %p53, %p54
      %p56 = scmp.ne.s32.totalorder %s45, %s48
      %p57 = scmp.eq.s32.totalorder %s26, 1
      %p58 = por %p56, %p57
      %p59 = scmp.ne.s32.totalorder %s48, %s49
      %p60 = scmp.eq.s32.totalorder %s26, 0
      %p61 = por %p59, %p60
      %p62 = scmp.ne.s32.totalorder %s48, %s49
      %p63 = scmp.eq.s32.totalorder %s27, 1
      %p64 = por %p62, %p63
      %p66 = scmp.ne.s32.totalorder %s49, %s65
      %p67 = scmp.eq.s32.totalorder %s27, 0
      %p68 = por %p66, %p67
      %s69 = ssub.s32 %s28, %s40
      %s70 = ssub.s32 %s29, %s36
      %s71 = sor.u32 %s69, %s70
      %p72 = scmp.eq.s32.totalorder %s71, 0
      %s74 = sadd.s32 %s73, 1
      %s75 = scalar_select %p72, %s73, %s74
      %p78 = pneg %p72
      %p79 = scmp.eq.s32.totalorder %s21, 1
      %p80 = por %p78, %p79
      %p81 = scmp.ne.s32.totalorder %s73, %s76
      %p82 = scmp.eq.s32.totalorder %s21, 0
      %p83 = por %p81, %p82
      %p84 = scmp.ne.s32.totalorder %s73, %s76
      %p85 = scmp.eq.s32.totalorder %s26, 1
      %p86 = por %p84, %p85
      %p87 = scmp.ne.s32.totalorder %s76, %s77
      %p88 = scmp.eq.s32.totalorder %s26, 0
      %p89 = por %p87, %p88
      %p90 = scmp.ne.s32.totalorder %s76, %s77
      %p91 = scmp.eq.s32.totalorder %s27, 1
      %p92 = por %p90, %p91
      %p94 = scmp.ne.s32.totalorder %s77, %s93
      %p95 = scmp.eq.s32.totalorder %s27, 0
      %p96 = por %p94, %p95
      %s98 = sadd.s32 %s97, 1
      %p101 = scmp.eq.s32.totalorder %s21, 1
      %p102 = scmp.ne.s32.totalorder %s97, %s99
      %p103 = scmp.eq.s32.totalorder %s21, 0
      %p104 = por %p102, %p103
      %p105 = scmp.ne.s32.totalorder %s97, %s99
      %p106 = scmp.eq.s32.totalorder %s26, 1
      %p107 = por %p105, %p106
      %p108 = scmp.ne.s32.totalorder %s99, %s100
      %p109 = scmp.eq.s32.totalorder %s26, 0
      %p110 = por %p108, %p109
      %p111 = scmp.ne.s32.totalorder %s99, %s100
      %p112 = scmp.eq.s32.totalorder %s27, 1
      %p113 = por %p111, %p112
      %p115 = scmp.ne.s32.totalorder %s100, %s114
      %p116 = scmp.eq.s32.totalorder %s27, 0
      %p117 = por %p115, %p116
      %s119 = sadd.s32 %s118, 1
      %p122 = scmp.eq.s32.totalorder %s21, 1
      %p123 = scmp.ne.s32.totalorder %s118, %s120
      %p124 = scmp.eq.s32.totalorder %s21, 0
      %p125 = por %p123, %p124
      %p126 = scmp.ne.s32.totalorder %s118, %s120
      %p127 = scmp.eq.s32.totalorder %s26, 1
      %p128 = por %p126, %p127
      %p129 = scmp.ne.s32.totalorder %s120, %s121
      %p130 = scmp.eq.s32.totalorder %s26, 0
      %p131 = por %p129, %p130
      %p132 = scmp.ne.s32.totalorder %s120, %s121
      %p133 = scmp.eq.s32.totalorder %s27, 1
      %p134 = por %p132, %p133
      %p136 = scmp.ne.s32.totalorder %s121, %s135
      %p137 = scmp.eq.s32.totalorder %s27, 0
      %p138 = por %p136, %p137
      %s140 = sadd.s32 %s139, 1
      %p143 = scmp.eq.s32.totalorder %s21, 1
      %p144 = scmp.ne.s32.totalorder %s139, %s141
      %p145 = scmp.eq.s32.totalorder %s21, 0
      %p146 = por %p144, %p145
      %p147 = scmp.ne.s32.totalorder %s139, %s141
      %p148 = scmp.eq.s32.totalorder %s26, 1
      %p149 = por %p147, %p148
      %p150 = scmp.ne.s32.totalorder %s141, %s142
      %p151 = scmp.eq.s32.totalorder %s26, 0
      %p152 = por %p150, %p151
      %p153 = scmp.ne.s32.totalorder %s141, %s142
      %p154 = scmp.eq.s32.totalorder %s27, 1
      %p155 = por %p153, %p154
      %p157 = scmp.ne.s32.totalorder %s142, %s156
      %p158 = scmp.eq.s32.totalorder %s27, 0
      %p159 = por %p157, %p158
      %s160 = ssub.s32 %s28, %s40
      %s161 = ssub.s32 %s29, %s36
      %s162 = sor.u32 %s160, %s161
      %p163 = scmp.eq.s32.totalorder %s162, 0
      %s165 = sadd.s32 %s164, 1
      %s166 = scalar_select %p163, %s164, %s165
      %p169 = pneg %p163
      %p170 = scmp.eq.s32.totalorder %s21, 1
      %p171 = por %p169, %p170
      %p172 = scmp.ne.s32.totalorder %s164, %s167
      %p173 = scmp.eq.s32.totalorder %s21, 0
      %p174 = por %p172, %p173
      %p175 = scmp.ne.s32.totalorder %s164, %s167
      %p176 = scmp.eq.s32.totalorder %s26, 1
      %p177 = por %p175, %p176
      %p178 = scmp.ne.s32.totalorder %s167, %s168
      %p179 = scmp.eq.s32.totalorder %s26, 0
      %p180 = por %p178, %p179
      %p181 = scmp.ne.s32.totalorder %s167, %s168
      %p182 = scmp.eq.s32.totalorder %s27, 1
      %p183 = por %p181, %p182
      %p185 = scmp.ne.s32.totalorder %s168, %s184
      %p186 = scmp.eq.s32.totalorder %s27, 0
      %p187 = por %p185, %p186
      %s188 = ssub.s32 %s28, %s40
      %s189 = ssub.s32 %s29, %s36
      %s190 = sor.u32 %s188, %s189
      %p191 = scmp.eq.s32.totalorder %s190, 0
      %s193 = sadd.s32 %s192, 1
      %s194 = scalar_select %p191, %s192, %s193
      %p197 = pneg %p191
      %p198 = scmp.eq.s32.totalorder %s21, 1
      %p199 = por %p197, %p198
      %p200 = scmp.ne.s32.totalorder %s192, %s195
      %p201 = scmp.eq.s32.totalorder %s21, 0
      %p202 = por %p200, %p201
      %p203 = scmp.ne.s32.totalorder %s192, %s195
      %p204 = scmp.eq.s32.totalorder %s26, 1
      %p205 = por %p203, %p204
      %p206 = scmp.ne.s32.totalorder %s195, %s196
      %p207 = scmp.eq.s32.totalorder %s26, 0
      %p208 = por %p206, %p207
      %p209 = scmp.ne.s32.totalorder %s195, %s196
      %p210 = scmp.eq.s32.totalorder %s27, 1
      %p211 = por %p209, %p210
      %p213 = scmp.ne.s32.totalorder %s196, %s212
      %p214 = scmp.eq.s32.totalorder %s27, 0
      %p215 = por %p213, %p214
      %s216 = ssub.s32 %s28, %s40
      %s217 = ssub.s32 %s29, %s36
      %s218 = sor.u32 %s216, %s217
      %p219 = scmp.eq.s32.totalorder %s218, 0
      %s221 = sadd.s32 %s220, 1
      %s222 = scalar_select %p219, %s220, %s221
      %p225 = pneg %p219
      %p226 = scmp.eq.s32.totalorder %s21, 1
      %p227 = por %p225, %p226
      %p228 = scmp.ne.s32.totalorder %s220, %s223
      %p229 = scmp.eq.s32.totalorder %s21, 0
      %p230 = por %p228, %p229
      %p231 = scmp.ne.s32.totalorder %s220, %s223
      %p232 = scmp.eq.s32.totalorder %s26, 1
      %p233 = por %p231, %p232
      %p234 = scmp.ne.s32.totalorder %s223, %s224
      %p235 = scmp.eq.s32.totalorder %s26, 0
      %p236 = por %p234, %p235
      %p237 = scmp.ne.s32.totalorder %s223, %s224
      %p238 = scmp.eq.s32.totalorder %s27, 1
      %p239 = por %p237, %p238
      %p241 = scmp.ne.s32.totalorder %s224, %s240
      %p242 = scmp.eq.s32.totalorder %s27, 0
      %p243 = por %p241, %p242
      %s244 = ssub.s32 %s28, %s40
      %s245 = ssub.s32 %s29, %s36
      %s246 = sor.u32 %s244, %s245
      %p247 = scmp.eq.s32.totalorder %s246, 0
      %s249 = sadd.s32 %s248, 1
      %s250 = scalar_select %p247, %s248, %s249
      %p253 = pneg %p247
      %p254 = scmp.eq.s32.totalorder %s21, 1
      %p255 = por %p253, %p254
      %p256 = scmp.ne.s32.totalorder %s248, %s251
      %p257 = scmp.eq.s32.totalorder %s21, 0
      %p258 = por %p256, %p257
      %p259 = scmp.ne.s32.totalorder %s248, %s251
      %p260 = scmp.eq.s32.totalorder %s26, 1
      %p261 = por %p259, %p260
      %p262 = scmp.ne.s32.totalorder %s251, %s252
      %p263 = scmp.eq.s32.totalorder %s26, 0
      %p264 = por %p262, %p263
      %p265 = scmp.ne.s32.totalorder %s251, %s252
      %p266 = scmp.eq.s32.totalorder %s27, 1
      %p267 = por %p265, %p266
      %p269 = scmp.ne.s32.totalorder %s252, %s268
      %p270 = scmp.eq.s32.totalorder %s27, 0
      %p271 = por %p269, %p270
      %p272 = scmp.le.s32.totalorder 1, %s21
      %p273 = scmp.lt.s32.totalorder %s21, 3
      %p274 = pnand %p272, %p273
      %p275 = pneg %p274
      // Predicated region
      $region9: #{tpu_custom_call.1} parent=5 // pred_check
        _
      $region10: #{tpu_custom_call.1} parent=5 // pred_check_branch
        %277 = sbr.rel (%p274) target = $region12
      $region11: #{tpu_custom_call.1} parent=5 // pred_region
        %s278 = ssub.s32 %s21, 1
        // Predicated region
        $region13: #{tpu_custom_call.1} parent=11 // pred_check
          %p279 = pneg %p110
        $region14: #{tpu_custom_call.1} parent=11 // pred_check_branch
          %281 = sbr.rel (%p279) target = $region16
        $region15: #{tpu_custom_call.1} parent=11 // pred_region
          _
        $region16: #{tpu_custom_call.1} parent=11 // pred_fallthru
          _
        // Predicated region
        $region17: #{tpu_custom_call.1} parent=11 // pred_check
          %p282 = pneg %p131
        $region18: #{tpu_custom_call.1} parent=11 // pred_check_branch
          %284 = sbr.rel (%p282) target = $region20
        $region19: #{tpu_custom_call.1} parent=11 // pred_region
          _
        $region20: #{tpu_custom_call.1} parent=11 // pred_fallthru
          _
        // Predicated region
        $region21: #{tpu_custom_call.1} parent=11 // pred_check
          %p285 = pneg %p152
        $region22: #{tpu_custom_call.1} parent=11 // pred_check_branch
          %287 = sbr.rel (%p285) target = $region24
        $region23: #{tpu_custom_call.1} parent=11 // pred_region
          _
        $region24: #{tpu_custom_call.1} parent=11 // pred_fallthru
          _
      $region12: #{tpu_custom_call.1} parent=5 // pred_fallthru
        _
      %p288 = scmp.lt.s32.totalorder %s21, 2
      // Predicated region
      $region25: #{tpu_custom_call.1} parent=5 // pred_check
        %p289 = pneg %p288
      $region26: #{tpu_custom_call.1} parent=5 // pred_check_branch
        %291 = sbr.rel (%p289) target = $region28
      $region27: #{tpu_custom_call.1} parent=5 // pred_region
        // Predicated region
        $region29: #{tpu_custom_call.1} parent=27 // pred_check
          %p292 = pneg %p55
        $region30: #{tpu_custom_call.1} parent=27 // pred_check_branch
          %294 = sbr.rel (%p292) target = $region32
        $region31: #{tpu_custom_call.1} parent=27 // pred_region
          %s295 = smul.u32 2, %s29
          %p296 = scmp.lt.s32.totalorder %s28, 1
          %s297 = scalar_select %p296, %s28, 1
          %p298 = scmp.lt.s32.totalorder %s295, 1
          %s299 = scalar_select %p298, %s295, 1
          %s300 = smul.addr %s297, 2
          %s301 = sadd.s32 %s299, %s300
          %s302 = smul.addr %s301, 4
          %s303 = scalar_lea.vmem %s0, %s302
          %s304 = smul.u32 2, %s29
        $region32: #{tpu_custom_call.1} parent=27 // pred_fallthru
          _
        // Predicated region
        $region33: #{tpu_custom_call.1} parent=27 // pred_check
          %p305 = pneg %p83
        $region34: #{tpu_custom_call.1} parent=27 // pred_check_branch
          %307 = sbr.rel (%p305) target = $region36
        $region35: #{tpu_custom_call.1} parent=27 // pred_region
          %s308 = smul.u32 2, %s29
          %p309 = scmp.lt.s32.totalorder %s28, 1
          %s310 = scalar_select %p309, %s28, 1
          %p311 = scmp.lt.s32.totalorder %s308, 1
          %s312 = scalar_select %p311, %s308, 1
          %s313 = smul.addr %s310, 2
          %s314 = sadd.s32 %s312, %s313
          %s315 = smul.addr %s314, 4
          %s316 = scalar_lea.vmem %s1, %s315
          %s317 = smul.u32 2, %s29
        $region36: #{tpu_custom_call.1} parent=27 // pred_fallthru
          _
      $region28: #{tpu_custom_call.1} parent=5 // pred_fallthru
        _
      %p318 = scmp.le.s32.totalorder 1, %s21
      %p319 = scmp.lt.s32.totalorder %s21, 3
      %p320 = pnand %p318, %p319
      %p321 = pneg %p320
      // Predicated region
      $region37: #{tpu_custom_call.1} parent=5 // pred_check
        _
      $region38: #{tpu_custom_call.1} parent=5 // pred_check_branch
        %323 = sbr.rel (%p320) target = $region40
      $region39: #{tpu_custom_call.1} parent=5 // pred_region
        %s324 = ssub.s32 %s21, 1
        %s325 = smul.u32 2, %s31
        %p326 = scmp.lt.s32.totalorder %s30, 1
        %s327 = scalar_select %p326, %s30, 1
        %p328 = scmp.lt.s32.totalorder %s325, 1
        %s329 = scalar_select %p328, %s325, 1
        %s330 = smul.addr %s327, 2
        %s331 = sadd.s32 %s329, %s330
        %s332 = smul.addr %s331, 4
        %s333 = scalar_lea.vmem %s0, %s332
        %p334 = pneg %p61
        %p335 = pneg %p58
        %s336 = smul.u32 2, %s31
        %p337 = scmp.lt.s32.totalorder %s30, 1
        %s338 = scalar_select %p337, %s30, 1
        %p339 = scmp.lt.s32.totalorder %s336, 1
        %s340 = scalar_select %p339, %s336, 1
        %s341 = smul.addr %s338, 2
        %s342 = sadd.s32 %s340, %s341
        %s343 = smul.addr %s342, 4
        %s344 = scalar_lea.vmem %s1, %s343
        %p345 = pneg %p89
        %p346 = pneg %p86
        %p347 = pneg %p110
        %p348 = pneg %p107
        %p349 = pneg %p131
        %p350 = pneg %p128
        %p351 = pneg %p152
        %p352 = pneg %p149
        %p353 = pneg %p180
        %p354 = pneg %p177
        %s355 = smul.u32 2, %s31
        %p356 = scmp.lt.s32.totalorder %s30, 1
        %s357 = scalar_select %p356, %s30, 1
        %p358 = scmp.lt.s32.totalorder %s355, 1
        %s359 = scalar_select %p358, %s355, 1
        %s360 = smul.addr %s357, 2
        %s361 = sadd.s32 %s359, %s360
        %s362 = smul.addr %s361, 4
        %s363 = scalar_lea.vmem %s5, %s362
        %p364 = pneg %p208
        %p365 = pneg %p205
        %s366 = smul.u32 2, %s31
        %p367 = scmp.lt.s32.totalorder %s30, 1
        %s368 = scalar_select %p367, %s30, 1
        %p369 = scmp.lt.s32.totalorder %s366, 1
        %s370 = scalar_select %p369, %s366, 1
        %s371 = smul.addr %s368, 2
        %s372 = sadd.s32 %s370, %s371
        %s373 = smul.addr %s372, 4
        %s374 = scalar_lea.vmem %s6, %s373
        %p375 = pneg %p236
        %p376 = pneg %p233
        %s377 = sand.u32 %s223, 1
        %s378 = scalar_lea.sflag [#allocation3], %s377
        %s379 = sand.u32 %s223, 1
        %s380 = smul.addr %s379, 4
        %s381 = scalar_lea.vmem [#allocation2], %s380
        %p382 = pneg %p264
        %p383 = pneg %p261
        %s384 = sand.u32 %s251, 1
        %s385 = scalar_lea.sflag [#allocation5], %s384
        %s386 = sand.u32 %s251, 1
        %s387 = smul.addr %s386, 4
        %s388 = scalar_lea.vmem [#allocation4], %s387
        %s389 = smul.u32 2, %s31
        %p390 = scmp.lt.s32.totalorder %s30, 1
        %s391 = scalar_select %p390, %s30, 1
        %p392 = scmp.lt.s32.totalorder %s389, 1
        %s393 = scalar_select %p392, %s389, 1
        %s394 = smul.addr %s391, 2
        %s395 = sadd.s32 %s393, %s394
        %s396 = smul.addr %s395, 4
        %s397 = scalar_lea.vmem %s0, %s396
        %s398 = smul.u32 2, %s31
        %s399 = smul.u32 2, %s31
        %p400 = scmp.lt.s32.totalorder %s30, 1
        %s401 = scalar_select %p400, %s30, 1
        %p402 = scmp.lt.s32.totalorder %s399, 1
        %s403 = scalar_select %p402, %s399, 1
        %s404 = smul.addr %s401, 2
        %s405 = sadd.s32 %s403, %s404
        %s406 = smul.addr %s405, 4
        %s407 = scalar_lea.vmem %s1, %s406
        %s408 = smul.u32 2, %s31
        %s409 = smul.u32 2, %s31
        %p410 = scmp.lt.s32.totalorder %s30, 1
        %s411 = scalar_select %p410, %s30, 1
        %p412 = scmp.lt.s32.totalorder %s409, 1
        %s413 = scalar_select %p412, %s409, 1
        %s414 = smul.addr %s411, 2
        %s415 = sadd.s32 %s413, %s414
        %s416 = smul.addr %s415, 4
        %s417 = scalar_lea.vmem %s5, %s416
        %s418 = smul.u32 2, %s31
        %s419 = smul.u32 2, %s31
        %p420 = scmp.lt.s32.totalorder %s30, 1
        %s421 = scalar_select %p420, %s30, 1
        %p422 = scmp.lt.s32.totalorder %s419, 1
        %s423 = scalar_select %p422, %s419, 1
        %s424 = smul.addr %s421, 2
        %s425 = sadd.s32 %s423, %s424
        %s426 = smul.addr %s425, 4
        %s427 = scalar_lea.vmem %s6, %s426
        %s428 = smul.u32 2, %s31
        %s429 = smul.u32 2, %s31
        %s430 = smul.u32 2, %s31
        %v431 = vld [vmem:[%s2] sm:$0xff]
        %v432 = vld [vmem:[%s2 + $0x8] sm:$0x3]
        %v433 = vld [vmem:[%s397] sm:$0x77]
        %v434 = vld [vmem:[%s3] sm:$0xff]
        %v435 = vld [vmem:[%s3 + $0x8] sm:$0x3]
        %v436 = vld [vmem:[%s407] sm:$0x77]
        %v438 = vcombine.high %v436, %v436
        %vm439 = vcmask 23552
        %v441 = vsel %vm439, %v434, 0
        %v444 = vsel %vm439, %v435, 0
        %vm446 = vcmask 1042432
        %v447 = vsel %vm446, %v436, 0
        %v449 = vsel %vm446, %v438, 0
        %451 = vmatprep.subr.mxu0 %v449
        %452 = vmatpush1.msra.mxu0 %v447
        %453 = vmatprep.subr.mxu0 0.0
        %454 = vmatpush1.msra.mxu0 0.0
        %455 = vmatprep.subr.mxu0 0.0
        %456 = vmatpush1.msra.mxu0 0.0
        %457 = vmatprep.subr.mxu0 0.0
        %458 = vmatpush1.msra.mxu0 0.0
        %459 = vmatprep.subr.mxu0 0.0
        %460 = vmatpush1.msra.mxu0 0.0
        %461 = vmatprep.subr.mxu0 0.0
        %462 = vmatpush1.msra.mxu0 0.0
        %463 = vmatprep.subr.mxu0 0.0
        %464 = vmatpush1.msra.mxu0 0.0
        %465 = vmatprep.subr.mxu0 0.0
        %466 = vmatpush1.msra.mxu0 0.0
        %467 = vmatprep.subr.mxu0 0.0
        %468 = vmatpush1.msra.mxu0 0.0
        %469 = vmatprep.subr.mxu0 0.0
        %470 = vmatpush1.msra.mxu0 0.0
        %471 = vmatprep.subr.mxu0 0.0
        %472 = vmatpush1.msra.mxu0 0.0
        %473 = vmatprep.subr.mxu0 0.0
        %474 = vmatpush1.msra.mxu0 0.0
        %475 = vmatprep.subr.mxu0 0.0
        %476 = vmatpush1.msra.mxu0 0.0
        %477 = vmatprep.subr.mxu0 0.0
        %478 = vmatpush1.msra.mxu0 0.0
        %479 = vmatprep.subr.mxu0 0.0
        %480 = vmatpush1.msra.mxu0 0.0
        %481 = vmatprep.subr.mxu0 0.0
        %482 = vmatpush1.msra.mxu0 0.0
        %483 = vmatprep.subr.mxu0 0.0
        %484 = vmatpush1.msra.mxu0 0.0
        %485 = vmatprep.subr.mxu0 0.0
        %486 = vmatpush1.msra.mxu0 0.0
        %487 = vmatprep.subr.mxu0 0.0
        %488 = vmatpush1.msra.mxu0 0.0
        %489 = vmatprep.subr.mxu0 0.0
        %490 = vmatpush1.msra.mxu0 0.0
        %491 = vmatprep.subr.mxu0 0.0
        %492 = vmatpush1.msra.mxu0 0.0
        %493 = vmatprep.subr.mxu0 0.0
        %494 = vmatpush1.msra.mxu0 0.0
        %495 = vmatprep.subr.mxu0 0.0
        %496 = vmatpush1.msra.mxu0 0.0
        %497 = vmatprep.subr.mxu0 0.0
        %498 = vmatpush1.msra.mxu0 0.0
        %499 = vmatprep.subr.mxu0 0.0
        %500 = vmatpush1.msra.mxu0 0.0
        %501 = vmatprep.subr.mxu0 0.0
        %502 = vmatpush1.msra.mxu0 0.0
        %503 = vmatprep.subr.mxu0 0.0
        %504 = vmatpush1.msra.mxu0 0.0
        %505 = vmatprep.subr.mxu0 0.0
        %506 = vmatpush1.msra.mxu0 0.0
        %507 = vmatprep.subr.mxu0 0.0
        %508 = vmatpush1.msra.mxu0 0.0
        %509 = vmatprep.subr.mxu0 0.0
        %510 = vmatpush1.msra.mxu0 0.0
        %511 = vmatprep.subr.mxu0 0.0
        %512 = vmatpush1.msra.mxu0 0.0
        %513 = vmatprep.subr.mxu0 0.0
        %514 = vmatpush1.msra.mxu0 0.0
        %515 = vmatprep.mubr.f32.mxu0 0.0
        %516 = vmatmul.mubr.f32.gmra.mrb[0].mxu0 %v441
        %v517 = vpop.f32.mrb[0].mxu0
        %v518 = vadd.f32 0.0, %v517
        %v519 = vpop.f32.mrb[0].mxu0
        %v520 = vadd.f32 0.0, %v519
        %521 = vmatprep.mubr.f32.mxu0 0.0
        %522 = vmatmul.mubr.f32.gmra.mrb[0].mxu0 %v444
        %v523 = vpop.f32.mrb[0].mxu0
        %v524 = vadd.f32 0.0, %v523
        %v525 = vpop.f32.mrb[0].mxu0
        %v526 = vadd.f32 0.0, %v525
        %527 = vdwg.mxu0
        %v529 = vcombine.high %v433, %v433
        %v531 = vsel %vm439, %v431, 0
        %v534 = vsel %vm439, %v432, 0
        %v536 = vsel %vm446, %v433, 0
        %v538 = vsel %vm446, %v529, 0
        %540 = vmatprep.subr.mxu0 %v538
        %541 = vmatpush1.msra.mxu0 %v536
        %542 = vmatprep.subr.mxu0 0.0
        %543 = vmatpush1.msra.mxu0 0.0
        %544 = vmatprep.subr.mxu0 0.0
        %545 = vmatpush1.msra.mxu0 0.0
        %546 = vmatprep.subr.mxu0 0.0
        %547 = vmatpush1.msra.mxu0 0.0
        %548 = vmatprep.subr.mxu0 0.0
        %549 = vmatpush1.msra.mxu0 0.0
        %550 = vmatprep.subr.mxu0 0.0
        %551 = vmatpush1.msra.mxu0 0.0
        %552 = vmatprep.subr.mxu0 0.0
        %553 = vmatpush1.msra.mxu0 0.0
        %554 = vmatprep.subr.mxu0 0.0
        %555 = vmatpush1.msra.mxu0 0.0
        %556 = vmatprep.subr.mxu0 0.0
        %557 = vmatpush1.msra.mxu0 0.0
        %558 = vmatprep.subr.mxu0 0.0
        %559 = vmatpush1.msra.mxu0 0.0
        %560 = vmatprep.subr.mxu0 0.0
        %561 = vmatpush1.msra.mxu0 0.0
        %562 = vmatprep.subr.mxu0 0.0
        %563 = vmatpush1.msra.mxu0 0.0
        %564 = vmatprep.subr.mxu0 0.0
        %565 = vmatpush1.msra.mxu0 0.0
        %566 = vmatprep.subr.mxu0 0.0
        %567 = vmatpush1.msra.mxu0 0.0
        %568 = vmatprep.subr.mxu0 0.0
        %569 = vmatpush1.msra.mxu0 0.0
        %570 = vmatprep.subr.mxu0 0.0
        %571 = vmatpush1.msra.mxu0 0.0
        %572 = vmatprep.subr.mxu0 0.0
        %573 = vmatpush1.msra.mxu0 0.0
        %574 = vmatprep.subr.mxu0 0.0
        %575 = vmatpush1.msra.mxu0 0.0
        %576 = vmatprep.subr.mxu0 0.0
        %577 = vmatpush1.msra.mxu0 0.0
        %578 = vmatprep.subr.mxu0 0.0
        %579 = vmatpush1.msra.mxu0 0.0
        %580 = vmatprep.subr.mxu0 0.0
        %581 = vmatpush1.msra.mxu0 0.0
        %582 = vmatprep.subr.mxu0 0.0
        %583 = vmatpush1.msra.mxu0 0.0
        %584 = vmatprep.subr.mxu0 0.0
        %585 = vmatpush1.msra.mxu0 0.0
        %586 = vmatprep.subr.mxu0 0.0
        %587 = vmatpush1.msra.mxu0 0.0
        %588 = vmatprep.subr.mxu0 0.0
        %589 = vmatpush1.msra.mxu0 0.0
        %590 = vmatprep.subr.mxu0 0.0
        %591 = vmatpush1.msra.mxu0 0.0
        %592 = vmatprep.subr.mxu0 0.0
        %593 = vmatpush1.msra.mxu0 0.0
        %594 = vmatprep.subr.mxu0 0.0
        %595 = vmatpush1.msra.mxu0 0.0
        %596 = vmatprep.subr.mxu0 0.0
        %597 = vmatpush1.msra.mxu0 0.0
        %598 = vmatprep.subr.mxu0 0.0
        %599 = vmatpush1.msra.mxu0 0.0
        %600 = vmatprep.subr.mxu0 0.0
        %601 = vmatpush1.msra.mxu0 0.0
        %602 = vmatprep.subr.mxu0 0.0
        %603 = vmatpush1.msra.mxu0 0.0
        %604 = vmatprep.mubr.f32.mxu0 0.0
        %605 = vmatmul.mubr.f32.gmra.mrb[0].mxu0 %v531
        %v606 = vpop.f32.mrb[0].mxu0
        %v607 = vadd.f32 %v518, %v606
        %v608 = vpop.f32.mrb[0].mxu0
        %v609 = vadd.f32 %v520, %v608
        %610 = vmatprep.mubr.f32.mxu0 0.0
        %611 = vmatmul.mubr.f32.gmra.mrb[0].mxu0 %v534
        %v612 = vpop.f32.mrb[0].mxu0
        %v613 = vadd.f32 %v524, %v612
        %v614 = vpop.f32.mrb[0].mxu0
        %v615 = vadd.f32 %v526, %v614
        %616 = vdwg.mxu0
        %v617 = vld [vmem:[%s4] sm:$0xff]
        %v618 = vld [vmem:[%s4 + $0x8] sm:$0x3]
        %620 = vset.pattern.permute.xlu0 0
        %621 = vperm.xlu0 %620, %v617
        %v622 = vpop.permute.xlu0 %621
        %625 = vset.pattern.permute.xlu0 0
        %626 = vperm.xlu0 %625, %v618
        %v627 = vpop.permute.xlu0 %626
        %v629 = vadd.f32 %v607, %v622
        %v630 = vadd.f32 %v609, %v622
        %v631 = vadd.f32 %v613, %v627
        %v632 = vadd.f32 %v615, %v627
        %v633 = vxor.u32 %v629, 2147483648
        %v634 = vxor.u32 %v630, 2147483648
        %v635 = vmul.f32 %v633, 1.442695
        %v636 = vpow.pop %v635
        %v637 = vmul.f32 %v634, 1.442695
        %v638 = vpow.pop %v637
        %v639 = vadd.f32 %v636, 1.0
        %v640 = vadd.f32 %v638, 1.0
        %v641 = vrcp.pop %v639
        %v642 = vmul.f32 1.0, %v641
        %v643 = vrcp.pop %v640
        %v644 = vmul.f32 1.0, %v643
        %v647 = vcombine.low %v642, %v644
        %649 = vst [vmem:[%s417] sm:$0x77] %v647
        %v650 = vcombine.high %v642, %v644
        %vm651 = vcmask 1040384
        %vm652 = vcmask 1044484
        %vm653 = vmor %vm651, %vm652
        %v654 = vrot.slane %v647, 7
        %v655 = vrot.slane %v654, 4
        %v656 = vrot.slane %v650, 7
        %v657 = vsel %vm653, %v655, %v656
        %659 = vst [vmem:[%s427] sm:$0x77] %v657
        %v660 = vtanh.pop %v629
        %v661 = vtanh.pop %v630
        %v662 = vmul.f32 %v660, 2.0
        %v663 = vmul.f32 %v661, 2.0
        %v666 = vcombine.high %v662, %v663
        %v668 = vunpack.c.l.s4 1983009808
        %v669 = vunpack.c.0.s8 %v668
        %v670 = vlaneseq
        %v671 = vshrl.u32 %v670, 7
        %v672 = vsub.s32 %v669, %v671
        %v673 = vrot.slane %v666, %v672
        %v674 = vcombine.high %v673, %v673
        %676 = vst [vmem:[%s381] sm:$0xf] %v674
        %v677 = vtanh.pop %v631
        %v678 = vtanh.pop %v632
        %v679 = vmul.f32 %v677, 2.0
        %v680 = vmul.f32 %v678, 2.0
        %v683 = vcombine.low %v679, %v680
        %v685 = vunpack.c.l.s4 1983009808
        %v686 = vunpack.c.0.s8 %v685
        %v687 = vlaneseq
        %v688 = vshrl.u32 %v687, 7
        %v689 = vsub.s32 %v686, %v688
        %v690 = vrot.slane %v683, %v689
        %692 = vst [vmem:[%s388] sm:$0xf] %v690
        %s693 = smul.u32 2, %s31
        %p694 = scmp.lt.s32.totalorder %s30, 1
        %s695 = scalar_select %p694, %s30, 1
        %p696 = scmp.lt.s32.totalorder %s693, 1
        %s697 = scalar_select %p696, %s693, 1
        %s698 = smul.addr %s695, 2
        %s699 = sadd.s32 %s697, %s698
        %s700 = smul.addr %s699, 4
        %s701 = scalar_lea.vmem %s5, %s700
        %s702 = smul.u32 2, %s31
        %p703 = scmp.lt.s32.totalorder %s30, 1
        %s704 = scalar_select %p703, %s30, 1
        %p705 = scmp.lt.s32.totalorder %s702, 1
        %s706 = scalar_select %p705, %s702, 1
        %s707 = smul.addr %s704, 2
        %s708 = sadd.s32 %s706, %s707
        %s709 = smul.addr %s708, 4
        %s710 = scalar_lea.vmem %s6, %s709
        %s711 = sand.u32 %s223, 1
        %s712 = scalar_lea.sflag [#allocation3], %s711
        %s713 = sand.u32 %s223, 1
        %s714 = smul.addr %s713, 4
        %s715 = scalar_lea.vmem [#allocation2], %s714
        %s716 = sand.u32 %s251, 1
        %s717 = scalar_lea.sflag [#allocation5], %s716
        %s718 = sand.u32 %s251, 1
        %s719 = smul.addr %s718, 4
        %s720 = scalar_lea.vmem [#allocation4], %s719
        // Predicated region
        $region41: #{tpu_custom_call.1} parent=39 // pred_check
          %p721 = pneg %p177
        $region42: #{tpu_custom_call.1} parent=39 // pred_check_branch
          %723 = sbr.rel (%p721) target = $region44
        $region43: #{tpu_custom_call.1} parent=39 // pred_region
          %s724 = smul.u32 2, %s31
        $region44: #{tpu_custom_call.1} parent=39 // pred_fallthru
          _
        // Predicated region
        $region45: #{tpu_custom_call.1} parent=39 // pred_check
          %p725 = pneg %p205
        $region46: #{tpu_custom_call.1} parent=39 // pred_check_branch
          %727 = sbr.rel (%p725) target = $region48
        $region47: #{tpu_custom_call.1} parent=39 // pred_region
          %s728 = smul.u32 2, %s31
        $region48: #{tpu_custom_call.1} parent=39 // pred_fallthru
          _
        // Predicated region
        $region49: #{tpu_custom_call.1} parent=39 // pred_check
          %p729 = pneg %p233
        $region50: #{tpu_custom_call.1} parent=39 // pred_check_branch
          %731 = sbr.rel (%p729) target = $region52
        $region51: #{tpu_custom_call.1} parent=39 // pred_region
          %s732 = smul.u32 2, %s31
          %s734 = ssub.s32 64, 64
          %735 = vsyncadd %s712, %s734
          %s736 = smul.addr %s30, 2
          %s737 = sadd.s32 %s732, %s736
          %s738 = smul.addr %s737, 32
          %s739 = scalar_lea.hbm %s7, %s738
          %s741 = sshll.u32 %s715, 4
          %s742 = int_to_ptr.vmem [resolvable:$true] %s741
          %744 = dma.vmem_to_hbm [thread:$0]  %s742, 64, %s739, %s712
        $region52: #{tpu_custom_call.1} parent=39 // pred_fallthru
          _
        // Predicated region
        $region53: #{tpu_custom_call.1} parent=39 // pred_check
          %p745 = pneg %p261
        $region54: #{tpu_custom_call.1} parent=39 // pred_check_branch
          %747 = sbr.rel (%p745) target = $region56
        $region55: #{tpu_custom_call.1} parent=39 // pred_region
          %s748 = smul.u32 2, %s31
          %s750 = ssub.s32 64, 64
          %751 = vsyncadd %s717, %s750
          %s752 = smul.addr %s30, 2
          %s753 = sadd.s32 %s748, %s752
          %s754 = smul.addr %s753, 32
          %s755 = scalar_lea.hbm %s8, %s754
          %s757 = sshll.u32 %s720, 4
          %s758 = int_to_ptr.vmem [resolvable:$true] %s757
          %760 = dma.vmem_to_hbm [thread:$0]  %s758, 64, %s755, %s717
        $region56: #{tpu_custom_call.1} parent=39 // pred_fallthru
          _
      $region40: #{tpu_custom_call.1} parent=5 // pred_fallthru
        _
      %p761 = scmp.le.s32.totalorder 2, %s21
      // Predicated region
      $region57: #{tpu_custom_call.1} parent=5 // pred_check
        %p762 = pneg %p761
      $region58: #{tpu_custom_call.1} parent=5 // pred_check_branch
        %764 = sbr.rel (%p762) target = $region60
      $region59: #{tpu_custom_call.1} parent=5 // pred_region
        %s765 = ssub.s32 %s21, 2
        // Predicated region
        $region61: #{tpu_custom_call.1} parent=59 // pred_check
          %p766 = pneg %p183
        $region62: #{tpu_custom_call.1} parent=59 // pred_check_branch
          %768 = sbr.rel (%p766) target = $region64
        $region63: #{tpu_custom_call.1} parent=59 // pred_region
          %s769 = smul.u32 2, %s33
          %p770 = scmp.lt.s32.totalorder %s32, 1
          %s771 = scalar_select %p770, %s32, 1
          %p772 = scmp.lt.s32.totalorder %s769, 1
          %s773 = scalar_select %p772, %s769, 1
          %s774 = smul.addr %s771, 2
          %s775 = sadd.s32 %s773, %s774
          %s776 = smul.addr %s775, 4
          %s777 = scalar_lea.vmem %s5, %s776
        $region64: #{tpu_custom_call.1} parent=59 // pred_fallthru
          _
        // Predicated region
        $region65: #{tpu_custom_call.1} parent=59 // pred_check
          %p778 = pneg %p211
        $region66: #{tpu_custom_call.1} parent=59 // pred_check_branch
          %780 = sbr.rel (%p778) target = $region68
        $region67: #{tpu_custom_call.1} parent=59 // pred_region
          %s781 = smul.u32 2, %s33
          %p782 = scmp.lt.s32.totalorder %s32, 1
          %s783 = scalar_select %p782, %s32, 1
          %p784 = scmp.lt.s32.totalorder %s781, 1
          %s785 = scalar_select %p784, %s781, 1
          %s786 = smul.addr %s783, 2
          %s787 = sadd.s32 %s785, %s786
          %s788 = smul.addr %s787, 4
          %s789 = scalar_lea.vmem %s6, %s788
        $region68: #{tpu_custom_call.1} parent=59 // pred_fallthru
          _
        // Predicated region
        $region69: #{tpu_custom_call.1} parent=59 // pred_check
          %p790 = pneg %p239
        $region70: #{tpu_custom_call.1} parent=59 // pred_check_branch
          %792 = sbr.rel (%p790) target = $region72
        $region71: #{tpu_custom_call.1} parent=59 // pred_region
          %s793 = sand.u32 %s224, 1
          %s794 = scalar_lea.sflag [#allocation3], %s793
          %s795 = sand.u32 %s224, 1
          %s796 = smul.addr %s795, 4
          %s797 = scalar_lea.vmem [#allocation2], %s796
          %798 = dma.done %s794, 64
        $region72: #{tpu_custom_call.1} parent=59 // pred_fallthru
          _
        // Predicated region
        $region73: #{tpu_custom_call.1} parent=59 // pred_check
          %p799 = pneg %p267
        $region74: #{tpu_custom_call.1} parent=59 // pred_check_branch
          %801 = sbr.rel (%p799) target = $region76
        $region75: #{tpu_custom_call.1} parent=59 // pred_region
          %s802 = sand.u32 %s252, 1
          %s803 = scalar_lea.sflag [#allocation5], %s802
          %s804 = sand.u32 %s252, 1
          %s805 = smul.addr %s804, 4
          %s806 = scalar_lea.vmem [#allocation4], %s805
          %807 = dma.done %s803, 64
        $region76: #{tpu_custom_call.1} parent=59 // pred_fallthru
          _
      $region60: #{tpu_custom_call.1} parent=5 // pred_fallthru
        _
    $region6: #{tpu_custom_call.1} parent=1 // loop_footer
      %s25 = sadd.s32 1, %s21
    $region7: #{tpu_custom_call.1} parent=1 // loop_footer_branch
      %20 = sbr.rel target = $region3
    $region8: #{tpu_custom_call.1} parent=1 // loop_exit
      _
    %808 = vsyncpa [#allocation3], 1
    %s809 = scalar_lea.sflag [#allocation3], 1
    %810 = vsyncpa %s809, 1
    %811 = vsyncpa [#allocation5], 1
    %s812 = scalar_lea.sflag [#allocation5], 1
    %813 = vsyncpa %s812, 1

</llo_original>
